<compile_context>
chip_gen: v7x
topology: tpu7x:2x2x1
jax: 0.10.0
libtpu: 0.0.40
codegen_flags: <defaults>
</compile_context>

<pallas_src>
import jax
import jax.numpy as jnp
from jax.experimental import pallas as pl
from jax.experimental.pallas import tpu as pltpu


def _simi_diff_fusion_kernel(x_ref, w_ref, o_ref):
    # x_ref : [TB, N, Dp] VMEM (input dtype)
    # w_ref : [1, Dp]     VMEM f32 (Linear weight row vector; resident tile)
    # o_ref : [TB, Dp]    VMEM (output dtype)
    x = x_ref[...].astype(jnp.float32)                    # [TB, N, Dp]
    w = w_ref[...]                                        # [1, Dp]

    # Linear(D -> 1): per-(batch, view) dot with the weight vector.
    # Bias omitted: softmax over N is shift-invariant, so it is a no-op.
    logits = jnp.sum(x * w[None, :, :], axis=-1, keepdims=True)   # [TB, N, 1]

    # softmax over the N (view) axis == dim=1 in the PyTorch module.
    m = jnp.max(logits, axis=1, keepdims=True)                    # [TB, 1, 1]
    e = jnp.exp(logits - m)                                       # [TB, N, 1]
    attn = e / jnp.sum(e, axis=1, keepdims=True)                  # [TB, N, 1]

    # attn^T @ x  ==  sum_n attn[:, n] * x[:, n, :]
    fused = jnp.sum(attn * x, axis=1)                             # [TB, Dp]

    o_ref[...] = jnp.tanh(fused).astype(o_ref.dtype)


def _choose_tb(B, N, Dp, itemsize, requested=None):
    """Pick a sublane-dense batch tile.

    Targets ~2 MiB of x per grid step (BlockSpec double-buffers it) while
    keeping >= 2 grid steps when the batch allows, so v7x megacore sharding
    has work on both TensorCores.
    """
    min_tb = 16 if itemsize == 2 else 8
    if requested is not None:
        return max(min_tb, (requested // min_tb) * min_tb)
    target_rows = max(min_tb, (2 << 20) // max(1, N * Dp * itemsize))
    half_b = max(min_tb, B // 2)
    tb = min(target_rows, half_b)
    return max(min_tb, (tb // min_tb) * min_tb)


def simi_diff_fusion(x, w, b=None, *, input_size, seq_len, tb=None):
    """x: [B, N, D]; w: [1, D] (nn.Linear weight); b: scalar bias (ignored —
    softmax over dim=1 is shift-invariant so the bias has no effect)."""
    B, N, D = x.shape
    assert D == input_size * seq_len
    del b  # mathematically a no-op for this forward pass

    out_dtype = x.dtype
    itemsize = jnp.dtype(x.dtype).itemsize

    # Pad feature dim to a lane multiple (128); pick batch tile and pad B to it.
    Dp = ((D + 127) // 128) * 128
    tb = _choose_tb(B, N, Dp, itemsize, requested=tb)
    Bp = ((B + tb - 1) // tb) * tb
    if Dp != D or Bp != B:
        x = jnp.pad(x, ((0, Bp - B), (0, 0), (0, Dp - D)))

    w2 = w.reshape(1, D).astype(jnp.float32)
    if Dp != D:
        w2 = jnp.pad(w2, ((0, 0), (0, Dp - D)))

    grid = (Bp // tb,)

    # Explicit VMEM budget: double-buffered x/out tiles + resident weight,
    # with headroom, capped well under v7x's 64 MiB physical VMEM.
    tile_bytes = (2 * tb * N * Dp * itemsize
                  + 2 * tb * Dp * jnp.dtype(out_dtype).itemsize
                  + 2 * Dp * 4)
    vmem_limit = min(max(2 * tile_bytes + (4 << 20), 16 << 20), 48 << 20)

    out = pl.pallas_call(
        _simi_diff_fusion_kernel,
        out_shape=jax.ShapeDtypeStruct((Bp, Dp), out_dtype),
        grid_spec=pltpu.PrefetchScalarGridSpec(
            num_scalar_prefetch=0,
            grid=grid,
            in_specs=[
                pl.BlockSpec((tb, N, Dp), lambda i: (i, 0, 0)),   # x tile
                pl.BlockSpec((1, Dp), lambda i: (0, 0)),          # weight (resident)
            ],
            out_specs=pl.BlockSpec((tb, Dp), lambda i: (i, 0)),
        ),
        compiler_params=pltpu.CompilerParams(
            dimension_semantics=("parallel",),
            vmem_limit_bytes=vmem_limit,
        ),
    )(x, w2)

    # PyTorch: .squeeze() then .view(B, seq_len, input_size); drop padding.
    return out[:B, :D].reshape(B, seq_len, input_size)


def _reference(x, w, b, *, input_size, seq_len):
    # Pure-JAX reference mirroring the PyTorch forward (bias included).
    logits = jnp.einsum("bnd,d->bn", x, w.reshape(-1)) + b          # [B, N]
    attn = jax.nn.softmax(logits, axis=1)[:, None, :]               # [B, 1, N]
    out = jnp.squeeze(jnp.matmul(attn, x), axis=1)                  # [B, D]
    return jnp.tanh(out).reshape(x.shape[0], seq_len, input_size)


if __name__ == "__main__":
    input_size = 16
    seq_len = 8
    D = input_size * seq_len       # 128
    B, N = 32, 4                   # batch, number of "views" being fused

    key = jax.random.PRNGKey(0)
    kx, kw, kb = jax.random.split(key, 3)

    x = jax.random.normal(kx, (B, N, D), dtype=jnp.float32)
    # Deterministic synthetic Linear(D, 1) parameters (weight [1, D], bias scalar).
    w = jax.random.normal(kw, (1, D), dtype=jnp.float32) * 0.05
    b = jax.random.normal(kb, (), dtype=jnp.float32) * 0.05

    y = simi_diff_fusion(x, w, b, input_size=input_size, seq_len=seq_len)
    y = jax.block_until_ready(y)

    y_ref = _reference(x, w, b, input_size=input_size, seq_len=seq_len)
    assert y.shape == (B, seq_len, input_size)
    assert jnp.allclose(y, y_ref, atol=1e-5, rtol=1e-5), "mismatch vs reference"

    print("KERNEL_OK")
</pallas_src>

<mosaic_0001>
module attributes {stable_mosaic.version = 11 : i64} {
  func.func @_simi_diff_fusion_kernel(%arg0: i32, %arg1: memref<16x4x128xf32, #tpu.memory_space<vmem>>, %arg2: memref<1x128xf32, #tpu.memory_space<vmem>>, %arg3: memref<16x128xf32, #tpu.memory_space<vmem>>) attributes {dimension_semantics = [#tpu.dimension_semantics<parallel>], iteration_bounds = array<i64: 2>, scalar_prefetch = 0 : i64, scratch_operands = 0 : i64, tpu.core_type = #tpu.core_type<tc>, window_params = [{transform_indices = @transform_0, window_bounds = array<i64: 16, 4, 128>}, {pipeline_mode = #tpu.pipeline_mode<synchronous>, transform_indices = @transform_1, window_bounds = array<i64: 1, 128>}, {transform_indices = @transform_2, window_bounds = array<i64: 16, 128>}]} {
    %c0 = arith.constant 0 : index
    %c0_0 = arith.constant 0 : index
    %c0_1 = arith.constant 0 : index
    %0 = vector.load %arg1[%c0, %c0_0, %c0_1] : memref<16x4x128xf32, #tpu.memory_space<vmem>>, vector<16x4x128xf32>
    %c0_2 = arith.constant 0 : index
    %c0_3 = arith.constant 0 : index
    %1 = vector.load %arg2[%c0_2, %c0_3] : memref<1x128xf32, #tpu.memory_space<vmem>>, vector<1x128xf32>
    %2 = vector.shape_cast %1 : vector<1x128xf32> to vector<1x1x128xf32>
    %3 = vector.broadcast %2 : vector<1x1x128xf32> to vector<16x4x128xf32>
    %4 = arith.mulf %0, %3 : vector<16x4x128xf32>
    %cst = arith.constant dense<0.000000e+00> : vector<16x4xf32>
    %5 = vector.multi_reduction <add>, %4, %cst [2] : vector<16x4x128xf32> to vector<16x4xf32>
    %6 = vector.shape_cast %5 : vector<16x4xf32> to vector<16x4x1xf32>
    %cst_4 = arith.constant dense<0xFF800000> : vector<16x1xf32>
    %7 = vector.multi_reduction <maximumf>, %6, %cst_4 [1] : vector<16x4x1xf32> to vector<16x1xf32>
    %8 = vector.shape_cast %7 : vector<16x1xf32> to vector<16x1x1xf32>
    %9 = vector.broadcast %8 : vector<16x1x1xf32> to vector<16x4x1xf32>
    %10 = arith.subf %6, %9 : vector<16x4x1xf32>
    %11 = math.exp %10 : vector<16x4x1xf32>
    %cst_5 = arith.constant dense<0.000000e+00> : vector<16x1xf32>
    %12 = vector.multi_reduction <add>, %11, %cst_5 [1] : vector<16x4x1xf32> to vector<16x1xf32>
    %13 = vector.shape_cast %12 : vector<16x1xf32> to vector<16x1x1xf32>
    %14 = vector.broadcast %13 : vector<16x1x1xf32> to vector<16x4x1xf32>
    %15 = arith.divf %11, %14 : vector<16x4x1xf32>
    %16 = vector.broadcast %15 : vector<16x4x1xf32> to vector<16x4x128xf32>
    %17 = arith.mulf %16, %0 : vector<16x4x128xf32>
    %cst_6 = arith.constant dense<0.000000e+00> : vector<16x128xf32>
    %18 = vector.multi_reduction <add>, %17, %cst_6 [1] : vector<16x4x128xf32> to vector<16x128xf32>
    %19 = math.tanh %18 : vector<16x128xf32>
    %c0_7 = arith.constant 0 : index
    %c0_8 = arith.constant 0 : index
    %20 = vector.load %arg3[%c0_7, %c0_8] : memref<16x128xf32, #tpu.memory_space<vmem>>, vector<16x128xf32>
    tpu.vector_store %arg3[%c0_7, %c0_8], %19 {strides = array<i32>} : memref<16x128xf32, #tpu.memory_space<vmem>>, vector<16x128xf32>,
    return
  }
  func.func @transform_0(%arg0: i32) -> (i32, i32, i32) {
    %c0_i32 = arith.constant 0 : i32
    %c0_i32_0 = arith.constant 0 : i32
    %c0_i32_1 = arith.constant 0 : i32
    return %arg0, %c0_i32, %c0_i32_0 : i32, i32, i32
  }
  func.func @transform_1(%arg0: i32) -> (i32, i32) {
    %c0_i32 = arith.constant 0 : i32
    %c0_i32_0 = arith.constant 0 : i32
    %c0_i32_1 = arith.constant 0 : i32
    return %c0_i32, %c0_i32_0 : i32, i32
  }
  func.func @transform_2(%arg0: i32) -> (i32, i32) {
    %c0_i32 = arith.constant 0 : i32
    %c0_i32_0 = arith.constant 0 : i32
    return %arg0, %c0_i32 : i32, i32
  }
}

</mosaic_0001>

<llo_original>
// kernel: tpu_custom_call.1
$region0: #{tpu_custom_call.1}
  #allocation0 [shape = 'u32[]', space=smem, size = 0x4, offset = 0x4, fixed_abs, tag = 'smem constant byte address 0x4 - core index']
  #allocation1 [shape = 'u32[144,128]{1,0:T(1,128)}', space=vmem, size = 0x12000, scoped, tag = 'internal scratch']
  %s0 = inlined_call_operand.hbm [shape: f32[32,4,128], index: 0, kind: input, shape index: {}]
  %s1 = inlined_call_operand.vmem [shape: f32[1,128], index: 1, kind: input, shape index: {}]
  %s2 = inlined_call_operand.hbm [shape: f32[32,128], index: 2, kind: output, shape index: {}]
  %s3 = sld [smem:[#allocation0]]
  $region45: #{tpu_custom_call.1} parent=0
    _
  %s5 = ssub.s32 1, %s3
  %s6 = scalar_select 0, %s5, %s3
  $region1: #{tpu_custom_call.1} parent=0
    #allocation2 [shape = 'u8[65536]{0}', space=vmem, size = 0x10000, scoped, tag = 'input window, operand 0']
    #allocation3 [shape = 's32[2]{0}', space=sflag, size = 0x8, scoped, tag = 'scoped memory for tpu_custom_call.1']
    #allocation4 [shape = 's32[2]{0}', space=sflag, size = 0x8, scoped, tag = 'scoped memory for tpu_custom_call.1']
    #allocation5 [shape = 'u8[16384]{0}', space=vmem, size = 0x4000, scoped, tag = 'output window, operand 0']
    %7 = vsyncpa [#allocation3], 0
    %s8 = scalar_lea.sflag [#allocation3], 1
    %9 = vsyncpa %s8, 0
    %10 = vsyncpa [#allocation4], 0
    %s11 = scalar_lea.sflag [#allocation4], 1
    %12 = vsyncpa %s11, 0
    loop: start=0, step=1, limit=4
    $region2: #{tpu_custom_call.1} parent=1 // loop_pre_header
      _
    $region3: #{tpu_custom_call.1} parent=1 // loop_header
      %s14 = sphi 0, %s18
      %p15 = scmp.ge.s32.totalorder %s14, 4
      %s24 = sphi 0, %s26
      %s27 = sphi 0, %s24
      %s28 = sphi 0, %s27
      %s44 = sphi 0, %s28
      %s48 = sphi 0, %s48
      %s50 = sphi 0, %s48
      %s51 = sphi 0, %s50
      %s65 = sphi 0, %s51
      %s71 = sphi 0, %s73
      %s74 = sphi 0, %s71
      %s75 = sphi 0, %s74
      %s91 = sphi 0, %s75
    $region4: #{tpu_custom_call.1} parent=1 // loop_header_branch
      %17 = sbr.rel (%p15) target = $region8
    $region5: #{tpu_custom_call.1} parent=1 // loop_body
      %s19 = ssub.s32 %s14, 1
      %s20 = ssub.s32 %s14, 2
      %s21 = sadd.s32 %s14, 1
      %s22 = ssub.s32 %s14, %s21
      %p23 = scmp.eq.s32.totalorder %s22, 0
      %s25 = sadd.s32 %s24, 1
      %s26 = scalar_select %p23, %s24, %s25
      %p29 = pneg %p23
      %p30 = scmp.eq.s32.totalorder %s14, 1
      %p31 = por %p29, %p30
      %p32 = scmp.ne.s32.totalorder %s24, %s27
      %p33 = scmp.eq.s32.totalorder %s14, 0
      %p34 = por %p32, %p33
      %p35 = scmp.ne.s32.totalorder %s24, %s27
      %p36 = scmp.eq.s32.totalorder %s19, 1
      %p37 = por %p35, %p36
      %p38 = scmp.ne.s32.totalorder %s27, %s28
      %p39 = scmp.eq.s32.totalorder %s19, 0
      %p40 = por %p38, %p39
      %p41 = scmp.ne.s32.totalorder %s27, %s28
      %p42 = scmp.eq.s32.totalorder %s20, 1
      %p43 = por %p41, %p42
      %p45 = scmp.ne.s32.totalorder %s28, %s44
      %p46 = scmp.eq.s32.totalorder %s20, 0
      %p47 = por %p45, %p46
      %s49 = sadd.s32 %s48, 1
      %p52 = scmp.eq.s32.totalorder %s14, 1
      %p53 = scmp.ne.s32.totalorder %s48, %s50
      %p54 = scmp.eq.s32.totalorder %s14, 0
      %p55 = por %p53, %p54
      %p56 = scmp.ne.s32.totalorder %s48, %s50
      %p57 = scmp.eq.s32.totalorder %s19, 1
      %p58 = por %p56, %p57
      %p59 = scmp.ne.s32.totalorder %s50, %s51
      %p60 = scmp.eq.s32.totalorder %s19, 0
      %p61 = por %p59, %p60
      %p62 = scmp.ne.s32.totalorder %s50, %s51
      %p63 = scmp.eq.s32.totalorder %s20, 1
      %p64 = por %p62, %p63
      %p66 = scmp.ne.s32.totalorder %s51, %s65
      %p67 = scmp.eq.s32.totalorder %s20, 0
      %p68 = por %p66, %p67
      %s69 = ssub.s32 %s14, %s21
      %p70 = scmp.eq.s32.totalorder %s69, 0
      %s72 = sadd.s32 %s71, 1
      %s73 = scalar_select %p70, %s71, %s72
      %p76 = pneg %p70
      %p77 = scmp.eq.s32.totalorder %s14, 1
      %p78 = por %p76, %p77
      %p79 = scmp.ne.s32.totalorder %s71, %s74
      %p80 = scmp.eq.s32.totalorder %s14, 0
      %p81 = por %p79, %p80
      %p82 = scmp.ne.s32.totalorder %s71, %s74
      %p83 = scmp.eq.s32.totalorder %s19, 1
      %p84 = por %p82, %p83
      %p85 = scmp.ne.s32.totalorder %s74, %s75
      %p86 = scmp.eq.s32.totalorder %s19, 0
      %p87 = por %p85, %p86
      %p88 = scmp.ne.s32.totalorder %s74, %s75
      %p89 = scmp.eq.s32.totalorder %s20, 1
      %p90 = por %p88, %p89
      %p92 = scmp.ne.s32.totalorder %s75, %s91
      %p93 = scmp.eq.s32.totalorder %s20, 0
      %p94 = por %p92, %p93
      %p95 = scmp.le.s32.totalorder 1, %s14
      %p96 = scmp.lt.s32.totalorder %s14, 3
      %p97 = pnand %p95, %p96
      %p98 = pneg %p97
      // Predicated region
      $region9: #{tpu_custom_call.1} parent=5 // pred_check
        _
      $region10: #{tpu_custom_call.1} parent=5 // pred_check_branch
        %100 = sbr.rel (%p97) target = $region12
      $region11: #{tpu_custom_call.1} parent=5 // pred_region
        %s101 = ssub.s32 %s14, 1
        // Predicated region
        $region13: #{tpu_custom_call.1} parent=11 // pred_check
          %p102 = pneg %p61
        $region14: #{tpu_custom_call.1} parent=11 // pred_check_branch
          %104 = sbr.rel (%p102) target = $region16
        $region15: #{tpu_custom_call.1} parent=11 // pred_region
          _
        $region16: #{tpu_custom_call.1} parent=11 // pred_fallthru
          _
      $region12: #{tpu_custom_call.1} parent=5 // pred_fallthru
        _
      %p105 = scmp.lt.s32.totalorder %s14, 2
      // Predicated region
      $region17: #{tpu_custom_call.1} parent=5 // pred_check
        %p106 = pneg %p105
      $region18: #{tpu_custom_call.1} parent=5 // pred_check_branch
        %108 = sbr.rel (%p106) target = $region20
      $region19: #{tpu_custom_call.1} parent=5 // pred_region
        // Predicated region
        $region21: #{tpu_custom_call.1} parent=19 // pred_check
          %p109 = pneg %p34
        $region22: #{tpu_custom_call.1} parent=19 // pred_check_branch
          %111 = sbr.rel (%p109) target = $region24
        $region23: #{tpu_custom_call.1} parent=19 // pred_region
          %s112 = sand.u32 %s24, 1
          %s113 = scalar_lea.sflag [#allocation3], %s112
          %s114 = sand.u32 %s24, 1
          %s115 = smul.addr %s114, 64
          %s116 = scalar_lea.vmem [#allocation2], %s115
          %s117 = smul.u32 16, %s14
          %s119 = ssub.s32 1024, 1024
          %120 = vsyncadd %s113, %s119
          %s121 = smul.addr %s117, 64
          %s122 = scalar_lea.hbm %s0, %s121
          %s123 = sshll.u32 %s116, 4
          %s124 = int_to_ptr.vmem [resolvable:$true] %s123
          %129 = dma.hbm_to_vmem [thread:$0]  %s122, 1024, %s124, %s113, 64, 64, 4
        $region24: #{tpu_custom_call.1} parent=19 // pred_fallthru
          _
      $region20: #{tpu_custom_call.1} parent=5 // pred_fallthru
        _
      %p130 = scmp.le.s32.totalorder 1, %s14
      %p131 = scmp.lt.s32.totalorder %s14, 3
      %p132 = pnand %p130, %p131
      %p133 = pneg %p132
      // Predicated region
      $region25: #{tpu_custom_call.1} parent=5 // pred_check
        _
      $region26: #{tpu_custom_call.1} parent=5 // pred_check_branch
        %135 = sbr.rel (%p132) target = $region28
      $region27: #{tpu_custom_call.1} parent=5 // pred_region
        %s136 = ssub.s32 %s14, 1
        %s137 = sand.u32 %s27, 1
        %s138 = scalar_lea.sflag [#allocation3], %s137
        %s139 = sand.u32 %s27, 1
        %s140 = smul.addr %s139, 64
        %s141 = scalar_lea.vmem [#allocation2], %s140
        // Predicated region
        $region29: #{tpu_custom_call.1} parent=27 // pred_check
          %p142 = pneg %p40
        $region30: #{tpu_custom_call.1} parent=27 // pred_check_branch
          %144 = sbr.rel (%p142) target = $region32
        $region31: #{tpu_custom_call.1} parent=27 // pred_region
          %145 = dma.done %s138, 1024
        $region32: #{tpu_custom_call.1} parent=27 // pred_fallthru
          _
        %s146 = sand.u32 %s27, 1
        %s147 = scalar_lea.sflag [#allocation3], %s146
        %s148 = sand.u32 %s27, 1
        %s149 = smul.addr %s148, 64
        %s150 = scalar_lea.vmem [#allocation2], %s149
        %p151 = pneg %p40
        %p152 = pneg %p37
        %p153 = pneg %p61
        %p154 = pneg %p58
        %p155 = pneg %p87
        %p156 = pneg %p84
        %s157 = sand.u32 %s74, 1
        %s158 = scalar_lea.sflag [#allocation4], %s157
        %s159 = sand.u32 %s74, 1
        %s160 = smul.addr %s159, 16
        %s161 = scalar_lea.vmem [#allocation5], %s160
        %s162 = smul.u32 16, %s19
        %s163 = smul.u32 2, %s19
        %v164 = vld [vmem:[%s141] sm:$0xf]
        %v165 = vld [vmem:[%s141 + $0x4] sm:$0xf]
        %v166 = vld [vmem:[%s141 + $0x8] sm:$0xf]
        %v167 = vld [vmem:[%s141 + $0xc] sm:$0xf]
        %v168 = vld [vmem:[%s141 + $0x10] sm:$0xf]
        %v169 = vld [vmem:[%s141 + $0x14] sm:$0xf]
        %v170 = vld [vmem:[%s141 + $0x18] sm:$0xf]
        %v171 = vld [vmem:[%s141 + $0x1c] sm:$0xf]
        %v172 = vld [vmem:[%s141 + $0x20] sm:$0xf]
        %v173 = vld [vmem:[%s141 + $0x24] sm:$0xf]
        %v174 = vld [vmem:[%s141 + $0x28] sm:$0xf]
        %v175 = vld [vmem:[%s141 + $0x2c] sm:$0xf]
        %v176 = vld [vmem:[%s141 + $0x30] sm:$0xf]
        %v177 = vld [vmem:[%s141 + $0x34] sm:$0xf]
        %v178 = vld [vmem:[%s141 + $0x38] sm:$0xf]
        %v179 = vld [vmem:[%s141 + $0x3c] sm:$0xf]
        %v180 = vld [vmem:[%s1] sm:$0x1]
        %v182 = vlaneseq
        %v183 = vshrl.u32 %v182, 7
        %v184 = vsub.s32 0, %v183
        %v185 = vrot.slane %v180, %v184
        %v187 = vmul.f32 %v164, %v185
        %v188 = vmul.f32 %v165, %v185
        %v189 = vmul.f32 %v166, %v185
        %v190 = vmul.f32 %v167, %v185
        %v191 = vmul.f32 %v168, %v185
        %v192 = vmul.f32 %v169, %v185
        %v193 = vmul.f32 %v170, %v185
        %v194 = vmul.f32 %v171, %v185
        %v195 = vmul.f32 %v172, %v185
        %v196 = vmul.f32 %v173, %v185
        %v197 = vmul.f32 %v174, %v185
        %v198 = vmul.f32 %v175, %v185
        %v199 = vmul.f32 %v176, %v185
        %v200 = vmul.f32 %v177, %v185
        %v201 = vmul.f32 %v178, %v185
        %v202 = vmul.f32 %v179, %v185
        %vm203 = vcmask 1043456
        %v204 = vsel %vm203, %v187, 0.0
        %205 = vadd.xlane.f32.xlu0 %v204
        %v206 = vpop.xlane.xlu0 %205
        %v207 = vsel %vm203, %v188, 0.0
        %208 = vadd.xlane.f32.xlu0 %v207
        %v209 = vpop.xlane.xlu0 %208
        %v210 = vsel %vm203, %v189, 0.0
        %211 = vadd.xlane.f32.xlu0 %v210
        %v212 = vpop.xlane.xlu0 %211
        %v213 = vsel %vm203, %v190, 0.0
        %214 = vadd.xlane.f32.xlu0 %v213
        %v215 = vpop.xlane.xlu0 %214
        %v216 = vsel %vm203, %v191, 0.0
        %217 = vadd.xlane.f32.xlu0 %v216
        %v218 = vpop.xlane.xlu0 %217
        %v219 = vsel %vm203, %v192, 0.0
        %220 = vadd.xlane.f32.xlu0 %v219
        %v221 = vpop.xlane.xlu0 %220
        %v222 = vsel %vm203, %v193, 0.0
        %223 = vadd.xlane.f32.xlu0 %v222
        %v224 = vpop.xlane.xlu0 %223
        %v225 = vsel %vm203, %v194, 0.0
        %226 = vadd.xlane.f32.xlu0 %v225
        %v227 = vpop.xlane.xlu0 %226
        %v228 = vsel %vm203, %v195, 0.0
        %229 = vadd.xlane.f32.xlu0 %v228
        %v230 = vpop.xlane.xlu0 %229
        %v231 = vsel %vm203, %v196, 0.0
        %232 = vadd.xlane.f32.xlu0 %v231
        %v233 = vpop.xlane.xlu0 %232
        %v234 = vsel %vm203, %v197, 0.0
        %235 = vadd.xlane.f32.xlu0 %v234
        %v236 = vpop.xlane.xlu0 %235
        %v237 = vsel %vm203, %v198, 0.0
        %238 = vadd.xlane.f32.xlu0 %v237
        %v239 = vpop.xlane.xlu0 %238
        %v240 = vsel %vm203, %v199, 0.0
        %241 = vadd.xlane.f32.xlu0 %v240
        %v242 = vpop.xlane.xlu0 %241
        %v243 = vsel %vm203, %v200, 0.0
        %244 = vadd.xlane.f32.xlu0 %v243
        %v245 = vpop.xlane.xlu0 %244
        %v246 = vsel %vm203, %v201, 0.0
        %247 = vadd.xlane.f32.xlu0 %v246
        %v248 = vpop.xlane.xlu0 %247
        %v249 = vsel %vm203, %v202, 0.0
        %250 = vadd.xlane.f32.xlu0 %v249
        %v251 = vpop.xlane.xlu0 %250
        %v252 = vsel %vm203, %v206, -inf
        %v253 = vrot.slane %v252, 4
        %v254 = vmax.f32 %v252, %v253
        %v255 = vrot.slane %v254, 2
        %v256 = vmax.f32 %v254, %v255
        %v257 = vrot.slane %v256, 1
        %v258 = vmax.f32 %v256, %v257
        %v259 = vsel %vm203, %v209, -inf
        %v260 = vrot.slane %v259, 4
        %v261 = vmax.f32 %v259, %v260
        %v262 = vrot.slane %v261, 2
        %v263 = vmax.f32 %v261, %v262
        %v264 = vrot.slane %v263, 1
        %v265 = vmax.f32 %v263, %v264
        %v266 = vsel %vm203, %v212, -inf
        %v267 = vrot.slane %v266, 4
        %v268 = vmax.f32 %v266, %v267
        %v269 = vrot.slane %v268, 2
        %v270 = vmax.f32 %v268, %v269
        %v271 = vrot.slane %v270, 1
        %v272 = vmax.f32 %v270, %v271
        %v273 = vsel %vm203, %v215, -inf
        %v274 = vrot.slane %v273, 4
        %v275 = vmax.f32 %v273, %v274
        %v276 = vrot.slane %v275, 2
        %v277 = vmax.f32 %v275, %v276
        %v278 = vrot.slane %v277, 1
        %v279 = vmax.f32 %v277, %v278
        %v280 = vsel %vm203, %v218, -inf
        %v281 = vrot.slane %v280, 4
        %v282 = vmax.f32 %v280, %v281
        %v283 = vrot.slane %v282, 2
        %v284 = vmax.f32 %v282, %v283
        %v285 = vrot.slane %v284, 1
        %v286 = vmax.f32 %v284, %v285
        %v287 = vsel %vm203, %v221, -inf
        %v288 = vrot.slane %v287, 4
        %v289 = vmax.f32 %v287, %v288
        %v290 = vrot.slane %v289, 2
        %v291 = vmax.f32 %v289, %v290
        %v292 = vrot.slane %v291, 1
        %v293 = vmax.f32 %v291, %v292
        %v294 = vsel %vm203, %v224, -inf
        %v295 = vrot.slane %v294, 4
        %v296 = vmax.f32 %v294, %v295
        %v297 = vrot.slane %v296, 2
        %v298 = vmax.f32 %v296, %v297
        %v299 = vrot.slane %v298, 1
        %v300 = vmax.f32 %v298, %v299
        %v301 = vsel %vm203, %v227, -inf
        %v302 = vrot.slane %v301, 4
        %v303 = vmax.f32 %v301, %v302
        %v304 = vrot.slane %v303, 2
        %v305 = vmax.f32 %v303, %v304
        %v306 = vrot.slane %v305, 1
        %v307 = vmax.f32 %v305, %v306
        %v308 = vsel %vm203, %v230, -inf
        %v309 = vrot.slane %v308, 4
        %v310 = vmax.f32 %v308, %v309
        %v311 = vrot.slane %v310, 2
        %v312 = vmax.f32 %v310, %v311
        %v313 = vrot.slane %v312, 1
        %v314 = vmax.f32 %v312, %v313
        %v315 = vsel %vm203, %v233, -inf
        %v316 = vrot.slane %v315, 4
        %v317 = vmax.f32 %v315, %v316
        %v318 = vrot.slane %v317, 2
        %v319 = vmax.f32 %v317, %v318
        %v320 = vrot.slane %v319, 1
        %v321 = vmax.f32 %v319, %v320
        %v322 = vsel %vm203, %v236, -inf
        %v323 = vrot.slane %v322, 4
        %v324 = vmax.f32 %v322, %v323
        %v325 = vrot.slane %v324, 2
        %v326 = vmax.f32 %v324, %v325
        %v327 = vrot.slane %v326, 1
        %v328 = vmax.f32 %v326, %v327
        %v329 = vsel %vm203, %v239, -inf
        %v330 = vrot.slane %v329, 4
        %v331 = vmax.f32 %v329, %v330
        %v332 = vrot.slane %v331, 2
        %v333 = vmax.f32 %v331, %v332
        %v334 = vrot.slane %v333, 1
        %v335 = vmax.f32 %v333, %v334
        %v336 = vsel %vm203, %v242, -inf
        %v337 = vrot.slane %v336, 4
        %v338 = vmax.f32 %v336, %v337
        %v339 = vrot.slane %v338, 2
        %v340 = vmax.f32 %v338, %v339
        %v341 = vrot.slane %v340, 1
        %v342 = vmax.f32 %v340, %v341
        %v343 = vsel %vm203, %v245, -inf
        %v344 = vrot.slane %v343, 4
        %v345 = vmax.f32 %v343, %v344
        %v346 = vrot.slane %v345, 2
        %v347 = vmax.f32 %v345, %v346
        %v348 = vrot.slane %v347, 1
        %v349 = vmax.f32 %v347, %v348
        %v350 = vsel %vm203, %v248, -inf
        %v351 = vrot.slane %v350, 4
        %v352 = vmax.f32 %v350, %v351
        %v353 = vrot.slane %v352, 2
        %v354 = vmax.f32 %v352, %v353
        %v355 = vrot.slane %v354, 1
        %v356 = vmax.f32 %v354, %v355
        %v357 = vsel %vm203, %v251, -inf
        %v358 = vrot.slane %v357, 4
        %v359 = vmax.f32 %v357, %v358
        %v360 = vrot.slane %v359, 2
        %v361 = vmax.f32 %v359, %v360
        %v362 = vrot.slane %v361, 1
        %v363 = vmax.f32 %v361, %v362
        %v364 = vsub.f32 %v206, %v258
        %v365 = vsub.f32 %v209, %v265
        %v366 = vsub.f32 %v212, %v272
        %v367 = vsub.f32 %v215, %v279
        %v368 = vsub.f32 %v218, %v286
        %v369 = vsub.f32 %v221, %v293
        %v370 = vsub.f32 %v224, %v300
        %v371 = vsub.f32 %v227, %v307
        %v372 = vsub.f32 %v230, %v314
        %v373 = vsub.f32 %v233, %v321
        %v374 = vsub.f32 %v236, %v328
        %v375 = vsub.f32 %v239, %v335
        %v376 = vsub.f32 %v242, %v342
        %v377 = vsub.f32 %v245, %v349
        %v378 = vsub.f32 %v248, %v356
        %v379 = vsub.f32 %v251, %v363
        %v380 = vmul.f32 %v364, 1.442695
        %v381 = vpow.pop %v380
        %v382 = vmul.f32 %v365, 1.442695
        %v383 = vpow.pop %v382
        %v384 = vmul.f32 %v366, 1.442695
        %v385 = vpow.pop %v384
        %v386 = vmul.f32 %v367, 1.442695
        %v387 = vpow.pop %v386
        %v388 = vmul.f32 %v368, 1.442695
        %v389 = vpow.pop %v388
        %v390 = vmul.f32 %v369, 1.442695
        %v391 = vpow.pop %v390
        %v392 = vmul.f32 %v370, 1.442695
        %v393 = vpow.pop %v392
        %v394 = vmul.f32 %v371, 1.442695
        %v395 = vpow.pop %v394
        %v396 = vmul.f32 %v372, 1.442695
        %v397 = vpow.pop %v396
        %v398 = vmul.f32 %v373, 1.442695
        %v399 = vpow.pop %v398
        %v400 = vmul.f32 %v374, 1.442695
        %v401 = vpow.pop %v400
        %v402 = vmul.f32 %v375, 1.442695
        %v403 = vpow.pop %v402
        %v404 = vmul.f32 %v376, 1.442695
        %v405 = vpow.pop %v404
        %v406 = vmul.f32 %v377, 1.442695
        %v407 = vpow.pop %v406
        %v408 = vmul.f32 %v378, 1.442695
        %v409 = vpow.pop %v408
        %v410 = vmul.f32 %v379, 1.442695
        %v411 = vpow.pop %v410
        %v412 = vsel %vm203, %v381, 0.0
        %v413 = vrot.slane %v412, 4
        %v414 = vadd.f32 %v412, %v413
        %v415 = vrot.slane %v414, 2
        %v416 = vadd.f32 %v414, %v415
        %v417 = vrot.slane %v416, 1
        %v418 = vadd.f32 %v416, %v417
        %v419 = vsel %vm203, %v383, 0.0
        %v420 = vrot.slane %v419, 4
        %v421 = vadd.f32 %v419, %v420
        %v422 = vrot.slane %v421, 2
        %v423 = vadd.f32 %v421, %v422
        %v424 = vrot.slane %v423, 1
        %v425 = vadd.f32 %v423, %v424
        %v426 = vsel %vm203, %v385, 0.0
        %v427 = vrot.slane %v426, 4
        %v428 = vadd.f32 %v426, %v427
        %v429 = vrot.slane %v428, 2
        %v430 = vadd.f32 %v428, %v429
        %v431 = vrot.slane %v430, 1
        %v432 = vadd.f32 %v430, %v431
        %v433 = vsel %vm203, %v387, 0.0
        %v434 = vrot.slane %v433, 4
        %v435 = vadd.f32 %v433, %v434
        %v436 = vrot.slane %v435, 2
        %v437 = vadd.f32 %v435, %v436
        %v438 = vrot.slane %v437, 1
        %v439 = vadd.f32 %v437, %v438
        %v440 = vsel %vm203, %v389, 0.0
        %v441 = vrot.slane %v440, 4
        %v442 = vadd.f32 %v440, %v441
        %v443 = vrot.slane %v442, 2
        %v444 = vadd.f32 %v442, %v443
        %v445 = vrot.slane %v444, 1
        %v446 = vadd.f32 %v444, %v445
        %v447 = vsel %vm203, %v391, 0.0
        %v448 = vrot.slane %v447, 4
        %v449 = vadd.f32 %v447, %v448
        %v450 = vrot.slane %v449, 2
        %v451 = vadd.f32 %v449, %v450
        %v452 = vrot.slane %v451, 1
        %v453 = vadd.f32 %v451, %v452
        %v454 = vsel %vm203, %v393, 0.0
        %v455 = vrot.slane %v454, 4
        %v456 = vadd.f32 %v454, %v455
        %v457 = vrot.slane %v456, 2
        %v458 = vadd.f32 %v456, %v457
        %v459 = vrot.slane %v458, 1
        %v460 = vadd.f32 %v458, %v459
        %v461 = vsel %vm203, %v395, 0.0
        %v462 = vrot.slane %v461, 4
        %v463 = vadd.f32 %v461, %v462
        %v464 = vrot.slane %v463, 2
        %v465 = vadd.f32 %v463, %v464
        %v466 = vrot.slane %v465, 1
        %v467 = vadd.f32 %v465, %v466
        %v468 = vsel %vm203, %v397, 0.0
        %v469 = vrot.slane %v468, 4
        %v470 = vadd.f32 %v468, %v469
        %v471 = vrot.slane %v470, 2
        %v472 = vadd.f32 %v470, %v471
        %v473 = vrot.slane %v472, 1
        %v474 = vadd.f32 %v472, %v473
        %v475 = vsel %vm203, %v399, 0.0
        %v476 = vrot.slane %v475, 4
        %v477 = vadd.f32 %v475, %v476
        %v478 = vrot.slane %v477, 2
        %v479 = vadd.f32 %v477, %v478
        %v480 = vrot.slane %v479, 1
        %v481 = vadd.f32 %v479, %v480
        %v482 = vsel %vm203, %v401, 0.0
        %v483 = vrot.slane %v482, 4
        %v484 = vadd.f32 %v482, %v483
        %v485 = vrot.slane %v484, 2
        %v486 = vadd.f32 %v484, %v485
        %v487 = vrot.slane %v486, 1
        %v488 = vadd.f32 %v486, %v487
        %v489 = vsel %vm203, %v403, 0.0
        %v490 = vrot.slane %v489, 4
        %v491 = vadd.f32 %v489, %v490
        %v492 = vrot.slane %v491, 2
        %v493 = vadd.f32 %v491, %v492
        %v494 = vrot.slane %v493, 1
        %v495 = vadd.f32 %v493, %v494
        %v496 = vsel %vm203, %v405, 0.0
        %v497 = vrot.slane %v496, 4
        %v498 = vadd.f32 %v496, %v497
        %v499 = vrot.slane %v498, 2
        %v500 = vadd.f32 %v498, %v499
        %v501 = vrot.slane %v500, 1
        %v502 = vadd.f32 %v500, %v501
        %v503 = vsel %vm203, %v407, 0.0
        %v504 = vrot.slane %v503, 4
        %v505 = vadd.f32 %v503, %v504
        %v506 = vrot.slane %v505, 2
        %v507 = vadd.f32 %v505, %v506
        %v508 = vrot.slane %v507, 1
        %v509 = vadd.f32 %v507, %v508
        %v510 = vsel %vm203, %v409, 0.0
        %v511 = vrot.slane %v510, 4
        %v512 = vadd.f32 %v510, %v511
        %v513 = vrot.slane %v512, 2
        %v514 = vadd.f32 %v512, %v513
        %v515 = vrot.slane %v514, 1
        %v516 = vadd.f32 %v514, %v515
        %v517 = vsel %vm203, %v411, 0.0
        %v518 = vrot.slane %v517, 4
        %v519 = vadd.f32 %v517, %v518
        %v520 = vrot.slane %v519, 2
        %v521 = vadd.f32 %v519, %v520
        %v522 = vrot.slane %v521, 1
        %v523 = vadd.f32 %v521, %v522
        %v524 = vrcp.pop %v418
        %v525 = vmul.f32 %v381, %v524
        %v526 = vrcp.pop %v425
        %v527 = vmul.f32 %v383, %v526
        %v528 = vrcp.pop %v432
        %v529 = vmul.f32 %v385, %v528
        %v530 = vrcp.pop %v439
        %v531 = vmul.f32 %v387, %v530
        %v532 = vrcp.pop %v446
        %v533 = vmul.f32 %v389, %v532
        %v534 = vrcp.pop %v453
        %v535 = vmul.f32 %v391, %v534
        %v536 = vrcp.pop %v460
        %v537 = vmul.f32 %v393, %v536
        %v538 = vrcp.pop %v467
        %v539 = vmul.f32 %v395, %v538
        %v540 = vrcp.pop %v474
        %v541 = vmul.f32 %v397, %v540
        %v542 = vrcp.pop %v481
        %v543 = vmul.f32 %v399, %v542
        %v544 = vrcp.pop %v488
        %v545 = vmul.f32 %v401, %v544
        %v546 = vrcp.pop %v495
        %v547 = vmul.f32 %v403, %v546
        %v548 = vrcp.pop %v502
        %v549 = vmul.f32 %v405, %v548
        %v550 = vrcp.pop %v509
        %v551 = vmul.f32 %v407, %v550
        %v552 = vrcp.pop %v516
        %v553 = vmul.f32 %v409, %v552
        %v554 = vrcp.pop %v523
        %v555 = vmul.f32 %v411, %v554
        %v556 = vmul.f32 %v525, %v164
        %v557 = vmul.f32 %v527, %v165
        %v558 = vmul.f32 %v529, %v166
        %v559 = vmul.f32 %v531, %v167
        %v560 = vmul.f32 %v533, %v168
        %v561 = vmul.f32 %v535, %v169
        %v562 = vmul.f32 %v537, %v170
        %v563 = vmul.f32 %v539, %v171
        %v564 = vmul.f32 %v541, %v172
        %v565 = vmul.f32 %v543, %v173
        %v566 = vmul.f32 %v545, %v174
        %v567 = vmul.f32 %v547, %v175
        %v568 = vmul.f32 %v549, %v176
        %v569 = vmul.f32 %v551, %v177
        %v570 = vmul.f32 %v553, %v178
        %v571 = vmul.f32 %v555, %v179
        %v572 = vsel %vm203, %v556, 0.0
        %v573 = vrot.slane %v572, 4
        %v574 = vadd.f32 %v572, %v573
        %v575 = vrot.slane %v574, 2
        %v576 = vadd.f32 %v574, %v575
        %v577 = vrot.slane %v576, 1
        %v578 = vadd.f32 %v576, %v577
        %v579 = vsel %vm203, %v557, 0.0
        %v580 = vrot.slane %v579, 4
        %v581 = vadd.f32 %v579, %v580
        %v582 = vrot.slane %v581, 2
        %v583 = vadd.f32 %v581, %v582
        %v584 = vrot.slane %v583, 1
        %v585 = vadd.f32 %v583, %v584
        %v586 = vsel %vm203, %v558, 0.0
        %v587 = vrot.slane %v586, 4
        %v588 = vadd.f32 %v586, %v587
        %v589 = vrot.slane %v588, 2
        %v590 = vadd.f32 %v588, %v589
        %v591 = vrot.slane %v590, 1
        %v592 = vadd.f32 %v590, %v591
        %v593 = vsel %vm203, %v559, 0.0
        %v594 = vrot.slane %v593, 4
        %v595 = vadd.f32 %v593, %v594
        %v596 = vrot.slane %v595, 2
        %v597 = vadd.f32 %v595, %v596
        %v598 = vrot.slane %v597, 1
        %v599 = vadd.f32 %v597, %v598
        %v600 = vsel %vm203, %v560, 0.0
        %v601 = vrot.slane %v600, 4
        %v602 = vadd.f32 %v600, %v601
        %v603 = vrot.slane %v602, 2
        %v604 = vadd.f32 %v602, %v603
        %v605 = vrot.slane %v604, 1
        %v606 = vadd.f32 %v604, %v605
        %v607 = vsel %vm203, %v561, 0.0
        %v608 = vrot.slane %v607, 4
        %v609 = vadd.f32 %v607, %v608
        %v610 = vrot.slane %v609, 2
        %v611 = vadd.f32 %v609, %v610
        %v612 = vrot.slane %v611, 1
        %v613 = vadd.f32 %v611, %v612
        %v614 = vsel %vm203, %v562, 0.0
        %v615 = vrot.slane %v614, 4
        %v616 = vadd.f32 %v614, %v615
        %v617 = vrot.slane %v616, 2
        %v618 = vadd.f32 %v616, %v617
        %v619 = vrot.slane %v618, 1
        %v620 = vadd.f32 %v618, %v619
        %v621 = vsel %vm203, %v563, 0.0
        %v622 = vrot.slane %v621, 4
        %v623 = vadd.f32 %v621, %v622
        %v624 = vrot.slane %v623, 2
        %v625 = vadd.f32 %v623, %v624
        %v626 = vrot.slane %v625, 1
        %v627 = vadd.f32 %v625, %v626
        %v628 = vsel %vm203, %v564, 0.0
        %v629 = vrot.slane %v628, 4
        %v630 = vadd.f32 %v628, %v629
        %v631 = vrot.slane %v630, 2
        %v632 = vadd.f32 %v630, %v631
        %v633 = vrot.slane %v632, 1
        %v634 = vadd.f32 %v632, %v633
        %v635 = vsel %vm203, %v565, 0.0
        %v636 = vrot.slane %v635, 4
        %v637 = vadd.f32 %v635, %v636
        %v638 = vrot.slane %v637, 2
        %v639 = vadd.f32 %v637, %v638
        %v640 = vrot.slane %v639, 1
        %v641 = vadd.f32 %v639, %v640
        %v642 = vsel %vm203, %v566, 0.0
        %v643 = vrot.slane %v642, 4
        %v644 = vadd.f32 %v642, %v643
        %v645 = vrot.slane %v644, 2
        %v646 = vadd.f32 %v644, %v645
        %v647 = vrot.slane %v646, 1
        %v648 = vadd.f32 %v646, %v647
        %v649 = vsel %vm203, %v567, 0.0
        %v650 = vrot.slane %v649, 4
        %v651 = vadd.f32 %v649, %v650
        %v652 = vrot.slane %v651, 2
        %v653 = vadd.f32 %v651, %v652
        %v654 = vrot.slane %v653, 1
        %v655 = vadd.f32 %v653, %v654
        %v656 = vsel %vm203, %v568, 0.0
        %v657 = vrot.slane %v656, 4
        %v658 = vadd.f32 %v656, %v657
        %v659 = vrot.slane %v658, 2
        %v660 = vadd.f32 %v658, %v659
        %v661 = vrot.slane %v660, 1
        %v662 = vadd.f32 %v660, %v661
        %v663 = vsel %vm203, %v569, 0.0
        %v664 = vrot.slane %v663, 4
        %v665 = vadd.f32 %v663, %v664
        %v666 = vrot.slane %v665, 2
        %v667 = vadd.f32 %v665, %v666
        %v668 = vrot.slane %v667, 1
        %v669 = vadd.f32 %v667, %v668
        %v670 = vsel %vm203, %v570, 0.0
        %v671 = vrot.slane %v670, 4
        %v672 = vadd.f32 %v670, %v671
        %v673 = vrot.slane %v672, 2
        %v674 = vadd.f32 %v672, %v673
        %v675 = vrot.slane %v674, 1
        %v676 = vadd.f32 %v674, %v675
        %v677 = vsel %vm203, %v571, 0.0
        %v678 = vrot.slane %v677, 4
        %v679 = vadd.f32 %v677, %v678
        %v680 = vrot.slane %v679, 2
        %v681 = vadd.f32 %v679, %v680
        %v682 = vrot.slane %v681, 1
        %v683 = vadd.f32 %v681, %v682
        %v684 = vtanh.pop %v578
        %v685 = vtanh.pop %v585
        %v686 = vtanh.pop %v592
        %v687 = vtanh.pop %v599
        %v688 = vtanh.pop %v606
        %v689 = vtanh.pop %v613
        %v690 = vtanh.pop %v620
        %v691 = vtanh.pop %v627
        %v692 = vtanh.pop %v634
        %v693 = vtanh.pop %v641
        %v694 = vtanh.pop %v648
        %v695 = vtanh.pop %v655
        %v696 = vtanh.pop %v662
        %v697 = vtanh.pop %v669
        %v698 = vtanh.pop %v676
        %v699 = vtanh.pop %v683
        %vm716 = vcmask 1041409
        %v717 = vsel %vm716, %v685, %v684
        %vm718 = vcmask 1042434
        %v719 = vsel %vm718, %v686, %v717
        %vm720 = vcmask 1043459
        %v721 = vsel %vm720, %v687, %v719
        %vm722 = vcmask 1044484
        %v723 = vsel %vm722, %v688, %v721
        %vm724 = vcmask 1045509
        %v725 = vsel %vm724, %v689, %v723
        %vm726 = vcmask 1046534
        %v727 = vsel %vm726, %v690, %v725
        %vm728 = vcmask 1047559
        %v729 = vsel %vm728, %v691, %v727
        %v730 = vsel %vm716, %v693, %v692
        %v731 = vsel %vm718, %v694, %v730
        %v732 = vsel %vm720, %v695, %v731
        %v733 = vsel %vm722, %v696, %v732
        %v734 = vsel %vm724, %v697, %v733
        %v735 = vsel %vm726, %v698, %v734
        %v736 = vsel %vm728, %v699, %v735
        %739 = vst [vmem:[%s161] sm:$0xff] %v729
        %740 = vst [vmem:[%s161 + $0x8] sm:$0xff] %v736
        %s741 = sand.u32 %s74, 1
        %s742 = scalar_lea.sflag [#allocation4], %s741
        %s743 = sand.u32 %s74, 1
        %s744 = smul.addr %s743, 16
        %s745 = scalar_lea.vmem [#allocation5], %s744
        // Predicated region
        $region33: #{tpu_custom_call.1} parent=27 // pred_check
          %p746 = pneg %p84
        $region34: #{tpu_custom_call.1} parent=27 // pred_check_branch
          %748 = sbr.rel (%p746) target = $region36
        $region35: #{tpu_custom_call.1} parent=27 // pred_region
          %s749 = smul.u32 2, %s19
          %s751 = ssub.s32 256, 256
          %752 = vsyncadd %s742, %s751
          %s753 = smul.addr %s749, 128
          %s754 = scalar_lea.hbm %s2, %s753
          %s755 = sshll.u32 %s745, 4
          %s756 = int_to_ptr.vmem [resolvable:$true] %s755
          %761 = dma.vmem_to_hbm [thread:$0]  %s756, 256, %s754, %s742, 128, 128, 8
        $region36: #{tpu_custom_call.1} parent=27 // pred_fallthru
          _
      $region28: #{tpu_custom_call.1} parent=5 // pred_fallthru
        _
      %p762 = scmp.le.s32.totalorder 2, %s14
      // Predicated region
      $region37: #{tpu_custom_call.1} parent=5 // pred_check
        %p763 = pneg %p762
      $region38: #{tpu_custom_call.1} parent=5 // pred_check_branch
        %765 = sbr.rel (%p763) target = $region40
      $region39: #{tpu_custom_call.1} parent=5 // pred_region
        %s766 = ssub.s32 %s14, 2
        // Predicated region
        $region41: #{tpu_custom_call.1} parent=39 // pred_check
          %p767 = pneg %p90
        $region42: #{tpu_custom_call.1} parent=39 // pred_check_branch
          %769 = sbr.rel (%p767) target = $region44
        $region43: #{tpu_custom_call.1} parent=39 // pred_region
          %s770 = sand.u32 %s75, 1
          %s771 = scalar_lea.sflag [#allocation4], %s770
          %s772 = sand.u32 %s75, 1
          %s773 = smul.addr %s772, 16
          %s774 = scalar_lea.vmem [#allocation5], %s773
          %775 = dma.done %s771, 256
        $region44: #{tpu_custom_call.1} parent=39 // pred_fallthru
          _
      $region40: #{tpu_custom_call.1} parent=5 // pred_fallthru
        _
    $region6: #{tpu_custom_call.1} parent=1 // loop_footer
      %s18 = sadd.s32 1, %s14
    $region7: #{tpu_custom_call.1} parent=1 // loop_footer_branch
      %13 = sbr.rel target = $region3
    $region8: #{tpu_custom_call.1} parent=1 // loop_exit
      _
    %776 = vsyncpa [#allocation3], 1
    %s777 = scalar_lea.sflag [#allocation3], 1
    %778 = vsyncpa %s777, 1
    %779 = vsyncpa [#allocation4], 1
    %s780 = scalar_lea.sflag [#allocation4], 1
    %781 = vsyncpa %s780, 1

</llo_original>
